<compile_context>
chip_gen: v5e
topology: v5e:2x2
jax: 0.10.0
libtpu: 0.0.40
codegen_flags: <defaults>
</compile_context>

<pallas_src>
import functools

import jax
import jax.numpy as jnp
from jax.experimental import pallas as pl
from jax.experimental.pallas import tpu as pltpu

HEAD_PAD = 128   # fused V|A head padded to one full lane width (lane-dense store)
TB_MAX = 1024    # batch-tile cap (per-step VMEM at 1024: ~0.6 MiB double-buffered)


def _round_up(n, m):
    return ((n + m - 1) // m) * m


def _cdiv(a, b):
    return -(-a // b)


def _is_v7x():
    try:
        return "v7" in jax.devices()[0].device_kind.lower()
    except Exception:
        return False


def dueling_dqn_kernel(x_ref, w1_ref, b1_ref, w2_ref, b2_ref, wh_ref, bh_ref,
                       out_ref):
    # bf16 operands on the MXU, f32 accumulate + f32 elementwise (v5e-safe).
    x = x_ref[...].astype(jnp.bfloat16)                                 # (TB, D)

    # fc1 + ReLU
    h1 = jnp.dot(x, w1_ref[...], preferred_element_type=jnp.float32)
    h1 = jnp.maximum(h1 + b1_ref[...], 0.0)                             # (TB, H)

    # fc2 + ReLU
    h2 = jnp.dot(h1.astype(jnp.bfloat16), w2_ref[...],
                 preferred_element_type=jnp.float32)
    h2 = jnp.maximum(h2 + b2_ref[...], 0.0)                             # (TB, H)

    # Fused V|A head: one lane-dense (TB, 128) matmul + unmasked 128-wide store.
    out = jnp.dot(h2.astype(jnp.bfloat16), wh_ref[...],
                  preferred_element_type=jnp.float32) + bh_ref[...]
    out_ref[...] = out.astype(out_ref.dtype)


def prepare_params(params):
    """One-time layout conversion, hoisted out of the hot path.

    Kernel layout (PyTorch nn.Linear weights are (out, in); we pre-transpose):
      w1t: (D, H)   bf16        b1: (1, H)        f32
      w2t: (H, H)   bf16        b2: (1, H)        f32
      wh : (H, 128) bf16  = [wv.T | wa.T | zero-pad]   (fused lane-dense head)
      bh : (1, 128) f32   = [bv   | ba   | zero-pad]
    """
    hidden = params["w1"].shape[0]
    actions = params["wa"].shape[0]
    assert 1 + actions <= HEAD_PAD, "fused head exceeds one lane width"

    wh = jnp.zeros((hidden, HEAD_PAD), jnp.float32)
    wh = wh.at[:, 0:1].set(params["wv"].T)
    wh = wh.at[:, 1:1 + actions].set(params["wa"].T)

    bh = jnp.zeros((1, HEAD_PAD), jnp.float32)
    bh = bh.at[0, 0:1].set(params["bv"])
    bh = bh.at[0, 1:1 + actions].set(params["ba"])

    prep = {
        "w1t": params["w1"].T.astype(jnp.bfloat16),
        "b1": params["b1"].reshape(1, -1).astype(jnp.float32),
        "w2t": params["w2"].T.astype(jnp.bfloat16),
        "b2": params["b2"].reshape(1, -1).astype(jnp.float32),
        "wh": wh.astype(jnp.bfloat16),
        "bh": bh,
    }
    return prep, actions


def _choose_tile(B, want_two_steps):
    """Padding-aware batch tile: multiple of 16, capped near TB_MAX."""
    b16 = _round_up(max(B, 16), 16)
    n_steps = max(2 if (want_two_steps and b16 >= 32) else 1,
                  _cdiv(b16, TB_MAX))
    tb = _round_up(_cdiv(b16, n_steps), 16)
    bp = tb * _cdiv(max(B, 1), tb)
    return tb, bp


@functools.partial(jax.jit, static_argnames=("actions",))
def dueling_dqn_forward(x, prep, *, actions):
    """x: (B, int_dims) f32.  prep: output of prepare_params.  Returns (V, A)."""
    B, D = x.shape
    H = prep["w1t"].shape[1]

    v7x = _is_v7x()
    TB, Bp = _choose_tile(B, want_two_steps=v7x)
    if Bp != B:
        x = jnp.pad(x, ((0, Bp - B), (0, 0)))
    grid = (Bp // TB,)

    # Only the batch-sharding core-parallel semantic changes codegen; plain
    # "parallel" is kept on single-TC v5e/v6e.
    batch_sem = pltpu.CORE_PARALLEL if v7x else "parallel"

    flops = 2 * Bp * (D * H + H * H + H * HEAD_PAD)
    bytes_accessed = (Bp * D * 4
                      + prep["w1t"].size * 2 + prep["w2t"].size * 2
                      + prep["wh"].size * 2
                      + prep["b1"].size * 4 + prep["b2"].size * 4
                      + prep["bh"].size * 4
                      + Bp * HEAD_PAD * 4)

    out = pl.pallas_call(
        dueling_dqn_kernel,
        out_shape=jax.ShapeDtypeStruct((Bp, HEAD_PAD), jnp.float32),
        grid_spec=pltpu.PrefetchScalarGridSpec(
            num_scalar_prefetch=0,
            grid=grid,
            in_specs=[
                pl.BlockSpec((TB, D), lambda i: (i, 0)),          # x batch tile
                pl.BlockSpec((D, H), lambda i: (0, 0)),           # w1.T (resident)
                pl.BlockSpec((1, H), lambda i: (0, 0)),           # b1
                pl.BlockSpec((H, H), lambda i: (0, 0)),           # w2.T (resident)
                pl.BlockSpec((1, H), lambda i: (0, 0)),           # b2
                pl.BlockSpec((H, HEAD_PAD), lambda i: (0, 0)),    # fused head W
                pl.BlockSpec((1, HEAD_PAD), lambda i: (0, 0)),    # fused head b
            ],
            out_specs=pl.BlockSpec((TB, HEAD_PAD), lambda i: (i, 0)),
        ),
        compiler_params=pltpu.CompilerParams(
            dimension_semantics=(batch_sem,)),
        cost_estimate=pl.CostEstimate(
            flops=flops, transcendentals=0, bytes_accessed=bytes_accessed),
    )(x, prep["w1t"], prep["b1"], prep["w2t"], prep["b2"],
      prep["wh"], prep["bh"])

    V = out[:B, 0:1]
    A = out[:B, 1:1 + actions]
    return V, A


def init_params(key, int_dims, hidden, actions):
    """Deterministic synthetic init mimicking nn.Linear shapes (PyTorch layout)."""
    ks = jax.random.split(key, 8)

    def u(k, shape, fan_in):
        bound = 1.0 / jnp.sqrt(jnp.float32(fan_in))
        return jax.random.uniform(k, shape, jnp.float32, -bound, bound)

    return {
        "w1": u(ks[0], (hidden, int_dims), int_dims),
        "b1": u(ks[1], (hidden,), int_dims),
        "w2": u(ks[2], (hidden, hidden), hidden),
        "b2": u(ks[3], (hidden,), hidden),
        "wv": u(ks[4], (1, hidden), hidden),
        "bv": u(ks[5], (1,), hidden),
        "wa": u(ks[6], (actions, hidden), hidden),
        "ba": u(ks[7], (actions,), hidden),
    }


def reference_forward_f32(x, p):
    """Exact PyTorch (full f32) semantics."""
    h1 = jnp.maximum(x @ p["w1"].T + p["b1"], 0.0)
    h2 = jnp.maximum(h1 @ p["w2"].T + p["b2"], 0.0)
    return h2 @ p["wv"].T + p["bv"], h2 @ p["wa"].T + p["ba"]


def reference_forward_bf16(x, p):
    """Emulates the kernel's bf16-operand / f32-accumulate MXU path."""
    bf, f32 = jnp.bfloat16, jnp.float32
    h1 = jnp.dot(x.astype(bf), p["w1"].T.astype(bf),
                 preferred_element_type=f32) + p["b1"]
    h1 = jnp.maximum(h1, 0.0)
    h2 = jnp.dot(h1.astype(bf), p["w2"].T.astype(bf),
                 preferred_element_type=f32) + p["b2"]
    h2 = jnp.maximum(h2, 0.0)
    V = jnp.dot(h2.astype(bf), p["wv"].T.astype(bf),
                preferred_element_type=f32) + p["bv"]
    A = jnp.dot(h2.astype(bf), p["wa"].T.astype(bf),
                preferred_element_type=f32) + p["ba"]
    return V, A


if __name__ == "__main__":
    B, INT_DIMS, HIDDEN, ACTIONS = 2, 16, 32, 4

    key = jax.random.PRNGKey(0)
    kx, kp = jax.random.split(key)
    x = jax.random.normal(kx, (B, INT_DIMS), jnp.float32)
    params = init_params(kp, INT_DIMS, HIDDEN, ACTIONS)

    prep, actions = prepare_params(params)   # one-time layout conversion

    # --- small-shape run (module-sized: B=2, D=16, H=32, A=4) ---
    V, A = dueling_dqn_forward(x, prep, actions=actions)
    V, A = jax.block_until_ready(V), jax.block_until_ready(A)
    assert V.shape == (B, 1) and A.shape == (B, ACTIONS)

    # Tight check vs. the bf16-operand/f32-accumulate reference path.
    Vb, Ab = reference_forward_bf16(x, params)
    assert jnp.allclose(V, Vb, atol=1e-3, rtol=1e-3)
    assert jnp.allclose(A, Ab, atol=1e-3, rtol=1e-3)

    # Loose check vs. full-f32 PyTorch semantics (bf16 MXU rounding only).
    Vf, Af = reference_forward_f32(x, params)
    assert jnp.allclose(V, Vf, atol=3e-2, rtol=3e-2)
    assert jnp.allclose(A, Af, atol=3e-2, rtol=3e-2)

    # --- padding-aware tile: B=300 -> TB=304, Bp=304, grid=(1,) ---
    xb = jax.random.normal(jax.random.PRNGKey(1), (300, INT_DIMS), jnp.float32)
    Vg, Ag = dueling_dqn_forward(xb, prep, actions=actions)
    jax.block_until_ready((Vg, Ag))
    Vgb, Agb = reference_forward_bf16(xb, params)
    assert Vg.shape == (300, 1) and Ag.shape == (300, ACTIONS)
    assert jnp.allclose(Vg, Vgb, atol=1e-3, rtol=1e-3)
    assert jnp.allclose(Ag, Agb, atol=1e-3, rtol=1e-3)

    # --- multi-step batch grid: B=1500 -> TB=752, Bp=1504, grid=(2,) ---
    xc = jax.random.normal(jax.random.PRNGKey(2), (1500, INT_DIMS), jnp.float32)
    Vh, Ah = dueling_dqn_forward(xc, prep, actions=actions)
    jax.block_until_ready((Vh, Ah))
    Vhb, Ahb = reference_forward_bf16(xc, params)
    assert Vh.shape == (1500, 1) and Ah.shape == (1500, ACTIONS)
    assert jnp.allclose(Vh, Vhb, atol=1e-3, rtol=1e-3)
    assert jnp.allclose(Ah, Ahb, atol=1e-3, rtol=1e-3)

    print("KERNEL_OK")
</pallas_src>

<mosaic_0001>
module attributes {stable_mosaic.version = 11 : i64} {
  func.func @dueling_dqn_kernel(%arg0: i32, %arg1: memref<16x16xf32, #tpu.memory_space<vmem>>, %arg2: memref<16x32xbf16, #tpu.memory_space<vmem>>, %arg3: memref<1x32xf32, #tpu.memory_space<vmem>>, %arg4: memref<32x32xbf16, #tpu.memory_space<vmem>>, %arg5: memref<1x32xf32, #tpu.memory_space<vmem>>, %arg6: memref<32x128xbf16, #tpu.memory_space<vmem>>, %arg7: memref<1x128xf32, #tpu.memory_space<vmem>>, %arg8: memref<16x128xf32, #tpu.memory_space<vmem>>) attributes {dimension_semantics = [#tpu.dimension_semantics<parallel>], iteration_bounds = array<i64: 1>, scalar_prefetch = 0 : i64, scratch_operands = 0 : i64, tpu.core_type = #tpu.core_type<tc>, window_params = [{transform_indices = @transform_0, window_bounds = array<i64: 16, 16>}, {pipeline_mode = #tpu.pipeline_mode<synchronous>, transform_indices = @transform_1, window_bounds = array<i64: 16, 32>}, {pipeline_mode = #tpu.pipeline_mode<synchronous>, transform_indices = @transform_2, window_bounds = array<i64: 1, 32>}, {pipeline_mode = #tpu.pipeline_mode<synchronous>, transform_indices = @transform_3, window_bounds = array<i64: 32, 32>}, {pipeline_mode = #tpu.pipeline_mode<synchronous>, transform_indices = @transform_4, window_bounds = array<i64: 1, 32>}, {pipeline_mode = #tpu.pipeline_mode<synchronous>, transform_indices = @transform_5, window_bounds = array<i64: 32, 128>}, {pipeline_mode = #tpu.pipeline_mode<synchronous>, transform_indices = @transform_6, window_bounds = array<i64: 1, 128>}, {transform_indices = @transform_7, window_bounds = array<i64: 16, 128>}]} {
    %c0 = arith.constant 0 : index
    %c0_0 = arith.constant 0 : index
    %0 = vector.load %arg1[%c0, %c0_0] : memref<16x16xf32, #tpu.memory_space<vmem>>, vector<16x16xf32>
    %1 = arith.truncf %0 : vector<16x16xf32> to vector<16x16xbf16>
    %c0_1 = arith.constant 0 : index
    %c0_2 = arith.constant 0 : index
    %2 = vector.load %arg2[%c0_1, %c0_2] : memref<16x32xbf16, #tpu.memory_space<vmem>>, vector<16x32xbf16>
    %cst = arith.constant dense<0.000000e+00> : vector<16x32xf32>
    %3 = tpu.matmul %1, %2, %cst {dimension_numbers = #tpu.dot_dimension_numbers<[1], [0], [0], [1], [0, 0, 1, 1], [], []>} : vector<16x16xbf16>, vector<16x32xbf16>, vector<16x32xf32> -> vector<16x32xf32>
    %c0_3 = arith.constant 0 : index
    %c0_4 = arith.constant 0 : index
    %4 = vector.load %arg3[%c0_3, %c0_4] : memref<1x32xf32, #tpu.memory_space<vmem>>, vector<1x32xf32>
    %5 = vector.broadcast %4 : vector<1x32xf32> to vector<16x32xf32>
    %6 = arith.addf %3, %5 : vector<16x32xf32>
    %cst_5 = arith.constant 0.000000e+00 : f32
    %7 = vector.broadcast %cst_5 : f32 to vector<16x32xf32>
    %8 = arith.maximumf %6, %7 : vector<16x32xf32>
    %9 = arith.truncf %8 : vector<16x32xf32> to vector<16x32xbf16>
    %c0_6 = arith.constant 0 : index
    %c0_7 = arith.constant 0 : index
    %10 = vector.load %arg4[%c0_6, %c0_7] : memref<32x32xbf16, #tpu.memory_space<vmem>>, vector<32x32xbf16>
    %cst_8 = arith.constant dense<0.000000e+00> : vector<16x32xf32>
    %11 = tpu.matmul %9, %10, %cst_8 {dimension_numbers = #tpu.dot_dimension_numbers<[1], [0], [0], [1], [0, 0, 1, 1], [], []>} : vector<16x32xbf16>, vector<32x32xbf16>, vector<16x32xf32> -> vector<16x32xf32>
    %c0_9 = arith.constant 0 : index
    %c0_10 = arith.constant 0 : index
    %12 = vector.load %arg5[%c0_9, %c0_10] : memref<1x32xf32, #tpu.memory_space<vmem>>, vector<1x32xf32>
    %13 = vector.broadcast %12 : vector<1x32xf32> to vector<16x32xf32>
    %14 = arith.addf %11, %13 : vector<16x32xf32>
    %cst_11 = arith.constant 0.000000e+00 : f32
    %15 = vector.broadcast %cst_11 : f32 to vector<16x32xf32>
    %16 = arith.maximumf %14, %15 : vector<16x32xf32>
    %17 = arith.truncf %16 : vector<16x32xf32> to vector<16x32xbf16>
    %c0_12 = arith.constant 0 : index
    %c0_13 = arith.constant 0 : index
    %18 = vector.load %arg6[%c0_12, %c0_13] : memref<32x128xbf16, #tpu.memory_space<vmem>>, vector<32x128xbf16>
    %cst_14 = arith.constant dense<0.000000e+00> : vector<16x128xf32>
    %19 = tpu.matmul %17, %18, %cst_14 {dimension_numbers = #tpu.dot_dimension_numbers<[1], [0], [0], [1], [0, 0, 1, 1], [], []>} : vector<16x32xbf16>, vector<32x128xbf16>, vector<16x128xf32> -> vector<16x128xf32>
    %c0_15 = arith.constant 0 : index
    %c0_16 = arith.constant 0 : index
    %20 = vector.load %arg7[%c0_15, %c0_16] : memref<1x128xf32, #tpu.memory_space<vmem>>, vector<1x128xf32>
    %21 = vector.broadcast %20 : vector<1x128xf32> to vector<16x128xf32>
    %22 = arith.addf %19, %21 : vector<16x128xf32>
    %c0_17 = arith.constant 0 : index
    %c0_18 = arith.constant 0 : index
    %23 = vector.load %arg8[%c0_17, %c0_18] : memref<16x128xf32, #tpu.memory_space<vmem>>, vector<16x128xf32>
    tpu.vector_store %arg8[%c0_17, %c0_18], %22 {strides = array<i32>} : memref<16x128xf32, #tpu.memory_space<vmem>>, vector<16x128xf32>,
    return
  }
  func.func @transform_0(%arg0: i32) -> (i32, i32) {
    %c0_i32 = arith.constant 0 : i32
    %c0_i32_0 = arith.constant 0 : i32
    return %arg0, %c0_i32 : i32, i32
  }
  func.func @transform_1(%arg0: i32) -> (i32, i32) {
    %c0_i32 = arith.constant 0 : i32
    %c0_i32_0 = arith.constant 0 : i32
    %c0_i32_1 = arith.constant 0 : i32
    return %c0_i32, %c0_i32_0 : i32, i32
  }
  func.func @transform_2(%arg0: i32) -> (i32, i32) {
    %c0_i32 = arith.constant 0 : i32
    %c0_i32_0 = arith.constant 0 : i32
    %c0_i32_1 = arith.constant 0 : i32
    return %c0_i32, %c0_i32_0 : i32, i32
  }
  func.func @transform_3(%arg0: i32) -> (i32, i32) {
    %c0_i32 = arith.constant 0 : i32
    %c0_i32_0 = arith.constant 0 : i32
    %c0_i32_1 = arith.constant 0 : i32
    return %c0_i32, %c0_i32_0 : i32, i32
  }
  func.func @transform_4(%arg0: i32) -> (i32, i32) {
    %c0_i32 = arith.constant 0 : i32
    %c0_i32_0 = arith.constant 0 : i32
    %c0_i32_1 = arith.constant 0 : i32
    return %c0_i32, %c0_i32_0 : i32, i32
  }
  func.func @transform_5(%arg0: i32) -> (i32, i32) {
    %c0_i32 = arith.constant 0 : i32
    %c0_i32_0 = arith.constant 0 : i32
    %c0_i32_1 = arith.constant 0 : i32
    return %c0_i32, %c0_i32_0 : i32, i32
  }
  func.func @transform_6(%arg0: i32) -> (i32, i32) {
    %c0_i32 = arith.constant 0 : i32
    %c0_i32_0 = arith.constant 0 : i32
    %c0_i32_1 = arith.constant 0 : i32
    return %c0_i32, %c0_i32_0 : i32, i32
  }
  func.func @transform_7(%arg0: i32) -> (i32, i32) {
    %c0_i32 = arith.constant 0 : i32
    %c0_i32_0 = arith.constant 0 : i32
    return %arg0, %c0_i32 : i32, i32
  }
}

</mosaic_0001>

<llo_original>
// kernel: dueling_dqn_forward.1
$region0: #{dueling_dqn_forward.1}
  #allocation0 [shape = 'u32[]', space=smem, size = 0x4, offset = 0x4, fixed_abs, tag = 'smem constant byte address 0x4 - core index']
  #allocation1 [shape = 'u32[72,128]{1,0:T(1,128)}', space=vmem, size = 0x9000, scoped, tag = 'internal scratch']
  %s0 = inlined_call_operand.vmem [shape: f32[16,16], index: 0, kind: input, shape index: {}]
  %s1 = inlined_call_operand.hbm [shape: bf16[16,32], index: 1, kind: input, shape index: {}]
  %s2 = inlined_call_operand.vmem [shape: f32[1,32], index: 2, kind: input, shape index: {}]
  %s3 = inlined_call_operand.vmem [shape: bf16[32,32], index: 3, kind: input, shape index: {}]
  %s4 = inlined_call_operand.vmem [shape: f32[1,32], index: 4, kind: input, shape index: {}]
  %s5 = inlined_call_operand.hbm [shape: bf16[32,128], index: 5, kind: input, shape index: {}]
  %s6 = inlined_call_operand.vmem [shape: f32[1,128], index: 6, kind: input, shape index: {}]
  %s7 = inlined_call_operand.vmem [shape: f32[16,128], index: 7, kind: output, shape index: {}]
  %s8 = sld [smem:[#allocation0]]
  $region46: #{dueling_dqn_forward.1} parent=0
    _
  %s10 = ssub.s32 1, %s8
  %s11 = scalar_select 0, %s10, %s8
  $region1: #{dueling_dqn_forward.1} parent=0
    #allocation2 [shape = 'u8[4096]{0}', space=vmem, size = 0x1000, scoped, tag = 'input window, operand 1, single buffered']
    #allocation3 [shape = 's32[1]{0}', space=sflag, size = 0x4, scoped, tag = 'scoped memory for dueling_dqn_forward.1']
    #allocation4 [shape = 'u8[8192]{0}', space=vmem, size = 0x2000, scoped, tag = 'input window, operand 5, single buffered']
    #allocation5 [shape = 's32[1]{0}', space=sflag, size = 0x4, scoped, tag = 'scoped memory for dueling_dqn_forward.1']
    %12 = vsyncpa [#allocation3], 0
    %13 = vsyncpa [#allocation5], 0
    // Predicated region
    $region2: #{dueling_dqn_forward.1} parent=1 // pred_check
      _
    $region3: #{dueling_dqn_forward.1} parent=1 // pred_check_branch
      %15 = sbr.rel (0) target = $region5
    $region4: #{dueling_dqn_forward.1} parent=1 // pred_region
      _
    $region5: #{dueling_dqn_forward.1} parent=1 // pred_fallthru
      _
    // Predicated region
    $region6: #{dueling_dqn_forward.1} parent=1 // pred_check
      _
    $region7: #{dueling_dqn_forward.1} parent=1 // pred_check_branch
      %17 = sbr.rel (0) target = $region9
    $region8: #{dueling_dqn_forward.1} parent=1 // pred_region
      %19 = vsyncadd [#allocation3], 0
      %s20 = sshll.u32 %s1, 4
      %s21 = int_to_ptr.hbm [resolvable:$true] %s20
      %s22 = sshll.u32 [#allocation2], 4
      %s23 = int_to_ptr.vmem [resolvable:$true] %s22
      %28 = dma.hbm_to_vmem [thread:$0]  %s21, 128, %s23, [#allocation3], 64, 64, 4
    $region9: #{dueling_dqn_forward.1} parent=1 // pred_fallthru
      _
    // Predicated region
    $region10: #{dueling_dqn_forward.1} parent=1 // pred_check
      _
    $region11: #{dueling_dqn_forward.1} parent=1 // pred_check_branch
      %30 = sbr.rel (0) target = $region13
    $region12: #{dueling_dqn_forward.1} parent=1 // pred_region
      _
    $region13: #{dueling_dqn_forward.1} parent=1 // pred_fallthru
      _
    // Predicated region
    $region14: #{dueling_dqn_forward.1} parent=1 // pred_check
      _
    $region15: #{dueling_dqn_forward.1} parent=1 // pred_check_branch
      %32 = sbr.rel (0) target = $region17
    $region16: #{dueling_dqn_forward.1} parent=1 // pred_region
      _
    $region17: #{dueling_dqn_forward.1} parent=1 // pred_fallthru
      _
    // Predicated region
    $region18: #{dueling_dqn_forward.1} parent=1 // pred_check
      _
    $region19: #{dueling_dqn_forward.1} parent=1 // pred_check_branch
      %34 = sbr.rel (0) target = $region21
    $region20: #{dueling_dqn_forward.1} parent=1 // pred_region
      _
    $region21: #{dueling_dqn_forward.1} parent=1 // pred_fallthru
      _
    // Predicated region
    $region22: #{dueling_dqn_forward.1} parent=1 // pred_check
      _
    $region23: #{dueling_dqn_forward.1} parent=1 // pred_check_branch
      %36 = sbr.rel (0) target = $region25
    $region24: #{dueling_dqn_forward.1} parent=1 // pred_region
      %38 = vsyncadd [#allocation5], 0
      %s39 = sshll.u32 %s5, 4
      %s40 = int_to_ptr.hbm [resolvable:$true] %s39
      %s41 = sshll.u32 [#allocation4], 4
      %s42 = int_to_ptr.vmem [resolvable:$true] %s41
      %47 = dma.hbm_to_vmem [thread:$0]  %s40, 256, %s42, [#allocation5], 64, 64, 4
    $region25: #{dueling_dqn_forward.1} parent=1 // pred_fallthru
      _
    // Predicated region
    $region26: #{dueling_dqn_forward.1} parent=1 // pred_check
      _
    $region27: #{dueling_dqn_forward.1} parent=1 // pred_check_branch
      %49 = sbr.rel (0) target = $region29
    $region28: #{dueling_dqn_forward.1} parent=1 // pred_region
      _
    $region29: #{dueling_dqn_forward.1} parent=1 // pred_fallthru
      _
    // Predicated region
    $region30: #{dueling_dqn_forward.1} parent=1 // pred_check
      _
    $region31: #{dueling_dqn_forward.1} parent=1 // pred_check_branch
      %51 = sbr.rel (0) target = $region33
    $region32: #{dueling_dqn_forward.1} parent=1 // pred_region
      %53 = dma.done [#allocation3], 128
    $region33: #{dueling_dqn_forward.1} parent=1 // pred_fallthru
      _
    // Predicated region
    $region34: #{dueling_dqn_forward.1} parent=1 // pred_check
      _
    $region35: #{dueling_dqn_forward.1} parent=1 // pred_check_branch
      %55 = sbr.rel (0) target = $region37
    $region36: #{dueling_dqn_forward.1} parent=1 // pred_region
      %57 = dma.done [#allocation5], 256
    $region37: #{dueling_dqn_forward.1} parent=1 // pred_fallthru
      _
    %v59 = vld [vmem:[%s0] sm:$0xff]
    %v60 = vld [vmem:[%s0 + $0x8] sm:$0xff]
    %v61 = vpack.c.bf16 %v60, %v59
    %v62 = vld [vmem:[#allocation2] sm:$0xf]
    %v63 = vld [vmem:[#allocation2 + $0x4] sm:$0xf]
    %v64 = vld [vmem:[%s2] sm:$0x1]
    %v66 = vperm.slane %v64, 0
    %v70 = vunpack.c.l.b16 %v62
    %v71 = vunpack.c.l.b16 %v63
    %v72 = vpack.c.b16 %v71, %v70
    %vm74 = vcmask 130048
    %v76 = vsel %vm74, %v61, 0
    %78 = vmatpush.bf16.msra.mxu0 0
    %79 = vmatpush.bf16.msra.mxu0 0
    %80 = vmatpush.bf16.msra.mxu0 0
    %81 = vmatpush.bf16.msra.mxu0 0
    %82 = vmatpush.bf16.msra.mxu0 0
    %83 = vmatpush.bf16.msra.mxu0 0
    %84 = vmatpush.bf16.msra.mxu0 0
    %85 = vmatpush.bf16.msra.mxu0 %v72
    %86 = vmatmul.bf16.gmra.mxu0 %v76
    %v87 = vpop.f32.mrf.mxu0
    %v88 = vadd.f32 %v66, %v87
    %v89 = vpop.f32.mrf.mxu0
    %v90 = vadd.f32 %v66, %v89
    %91 = vdwg.mxu0
    %v92 = vmax.f32 %v88, 0.0
    %v93 = vmax.f32 %v90, 0.0
    %v94 = vpack.c.bf16 %v93, %v92
    %v95 = vld [vmem:[%s3] sm:$0xf]
    %v96 = vld [vmem:[%s3 + $0x4] sm:$0xf]
    %v97 = vld [vmem:[%s3 + $0x8] sm:$0xf]
    %v98 = vld [vmem:[%s3 + $0xc] sm:$0xf]
    %v99 = vld [vmem:[%s4] sm:$0x1]
    %v101 = vperm.slane %v99, 0
    %v107 = vunpack.c.l.b16 %v95
    %v108 = vunpack.c.l.b16 %v96
    %v109 = vunpack.c.l.b16 %v97
    %v110 = vunpack.c.l.b16 %v98
    %v111 = vpack.c.b16 %v108, %v107
    %v112 = vpack.c.b16 %v110, %v109
    %vm115 = vcmask 261120
    %v117 = vsel %vm115, %v94, 0
    %119 = vmatpush.bf16.msra.mxu0 0
    %120 = vmatpush.bf16.msra.mxu0 0
    %121 = vmatpush.bf16.msra.mxu0 0
    %122 = vmatpush.bf16.msra.mxu0 0
    %123 = vmatpush.bf16.msra.mxu0 0
    %124 = vmatpush.bf16.msra.mxu0 0
    %125 = vmatpush.bf16.msra.mxu0 %v112
    %126 = vmatpush.bf16.msra.mxu0 %v111
    %127 = vmatmul.bf16.gmra.mxu0 %v117
    %v128 = vpop.f32.mrf.mxu0
    %v129 = vadd.f32 %v101, %v128
    %v130 = vpop.f32.mrf.mxu0
    %v131 = vadd.f32 %v101, %v130
    %132 = vdwg.mxu0
    %v133 = vmax.f32 %v129, 0.0
    %v134 = vmax.f32 %v131, 0.0
    %v135 = vpack.c.bf16 %v134, %v133
    %v136 = vld [vmem:[#allocation4] sm:$0xf]
    %v137 = vld [vmem:[#allocation4 + $0x4] sm:$0xf]
    %v138 = vld [vmem:[#allocation4 + $0x8] sm:$0xf]
    %v139 = vld [vmem:[#allocation4 + $0xc] sm:$0xf]
    %v140 = vld [vmem:[%s6] sm:$0x1]
    %v142 = vperm.slane %v140, 0
    %v148 = vunpack.c.l.b16 %v136
    %v149 = vunpack.c.l.b16 %v137
    %v150 = vunpack.c.l.b16 %v138
    %v151 = vunpack.c.l.b16 %v139
    %v152 = vpack.c.b16 %v149, %v148
    %v153 = vpack.c.b16 %v151, %v150
    %v157 = vsel %vm115, %v135, 0
    %159 = vmatpush.bf16.msra.mxu0 0
    %160 = vmatpush.bf16.msra.mxu0 0
    %161 = vmatpush.bf16.msra.mxu0 0
    %162 = vmatpush.bf16.msra.mxu0 0
    %163 = vmatpush.bf16.msra.mxu0 0
    %164 = vmatpush.bf16.msra.mxu0 0
    %165 = vmatpush.bf16.msra.mxu0 %v153
    %166 = vmatpush.bf16.msra.mxu0 %v152
    %167 = vmatmul.bf16.gmra.mxu0 %v157
    %v168 = vpop.f32.mrf.mxu0
    %v169 = vadd.f32 %v142, %v168
    %v170 = vpop.f32.mrf.mxu0
    %v171 = vadd.f32 %v142, %v170
    %172 = vdwg.mxu0
    %173 = vst [vmem:[%s7] sm:$0xff] %v169
    %174 = vst [vmem:[%s7 + $0x8] sm:$0xff] %v171
    // Predicated region
    $region38: #{dueling_dqn_forward.1} parent=1 // pred_check
      _
    $region39: #{dueling_dqn_forward.1} parent=1 // pred_check_branch
      %176 = sbr.rel (0) target = $region41
    $region40: #{dueling_dqn_forward.1} parent=1 // pred_region
      _
    $region41: #{dueling_dqn_forward.1} parent=1 // pred_fallthru
      _
    // Predicated region
    $region42: #{dueling_dqn_forward.1} parent=1 // pred_check
      _
    $region43: #{dueling_dqn_forward.1} parent=1 // pred_check_branch
      %178 = sbr.rel (0) target = $region45
    $region44: #{dueling_dqn_forward.1} parent=1 // pred_region
      _
    $region45: #{dueling_dqn_forward.1} parent=1 // pred_fallthru
      _
    %179 = vsyncpa [#allocation3], 1
    %180 = vsyncpa [#allocation5], 1

</llo_original>
